<compile_context>
chip_gen: v7x
topology: tpu7x:2x2x1
jax: 0.10.0
libtpu: 0.0.40
codegen_flags: <defaults>
</compile_context>

<pallas_src>
import math

import jax
import jax.numpy as jnp
from jax.experimental import pallas as pl
from jax.experimental.pallas import tpu as pltpu

_LANE = 128
_TARGET_TILE_BYTES = 2 * 1024 * 1024  # ~2 MiB/tile -> ~8 MiB double-buffered in+out


def _identity_kernel(x_ref, o_ref):
    # Pure pass-through of the current VMEM tile.
    o_ref[...] = x_ref[...]


def _sublane_multiple(dtype) -> int:
    # f32 -> 8, bf16/f16 -> 16, int8/fp8 -> 32 (sub-32-bit dtypes pack along sublanes).
    itemsize = jnp.dtype(dtype).itemsize
    return max(8, 32 // max(itemsize, 1))


def _pick_width(total: int) -> int:
    # Largest lane-dense width (multiple of 128) that divides the element count.
    for cand in (4096, 2048, 1024, 512, 256, 128):
        if total % cand == 0:
            return cand
    return _LANE  # no clean divisor -> pad the flat vector up to a multiple of 128


def features_forward(x):
    """Identity 'feature extraction' for the abstract Features module.

    x: jnp.ndarray of shape (N, C, H, W) -- NCHW, matching PyTorch.
    returns: jnp.ndarray of identical shape/dtype.
    """
    orig_shape = x.shape
    dtype = x.dtype
    total = int(math.prod(orig_shape))
    itemsize = jnp.dtype(dtype).itemsize
    sub = _sublane_multiple(dtype)

    # Lane-dense 2D slab: last dim a large multiple of 128.
    width = _pick_width(total)
    rows = (total + width - 1) // width
    padded_total = rows * width

    flat = x.reshape(total)
    if padded_total != total:
        # Only hit when the element count is not a multiple of 128 (rare for
        # CNN feature maps); costs one extra HBM pad copy of the input.
        flat = jnp.pad(flat, (0, padded_total - total))
    x2d = flat.reshape(rows, width)  # reshape of contiguous data: free, no copy

    # Tile rows sized by bytes (~2 MiB per tile), rounded to the packed-sublane multiple.
    target_rows = max(sub, (_TARGET_TILE_BYTES // (width * itemsize)) // sub * sub)

    if rows <= target_rows:
        # Whole (small) array as one block: block dims == array dims, so the
        # (8, 128) divisibility constraint is waived and VMEM use is tiny.
        tile_rows = rows
    else:
        tile_rows = target_rows

    grid = (pl.cdiv(rows, tile_rows),)  # boundary block (if any) masked by Pallas

    out2d = pl.pallas_call(
        _identity_kernel,
        out_shape=jax.ShapeDtypeStruct((rows, width), dtype),
        grid_spec=pltpu.PrefetchScalarGridSpec(
            num_scalar_prefetch=0,
            grid=grid,
            in_specs=[pl.BlockSpec((tile_rows, width), lambda i: (i, 0))],
            out_specs=pl.BlockSpec((tile_rows, width), lambda i: (i, 0)),
        ),
        compiler_params=pltpu.CompilerParams(
            # Parallel so megacore (v7x: 2 TCs) can shard grid steps across cores.
            dimension_semantics=("parallel",),
        ),
    )(x2d)

    out_flat = out2d.reshape(padded_total)
    if padded_total != total:
        out_flat = out_flat[:total]
    return out_flat.reshape(orig_shape)


class FeaturesJAX:
    """JAX mirror of the abstract `Features` module (no parameters)."""

    def __init__(self):
        self.feature_size = -1  # same sentinel as the PyTorch module

    def forward(self, x):
        # Abstract in PyTorch; here we run the identity pass-through kernel.
        return features_forward(x)

    def param_groups(self, start_lr, feature_mult=1):
        # No trainable parameters in the base class.
        return [{"params": [], "lr": start_lr * feature_mult}]

    # TODO(synk): load_model() is host-side checkpoint IO (torch.load / state_dict
    # filtering) with no Pallas/device equivalent; intentionally not implemented.


if __name__ == "__main__":
    key = jax.random.PRNGKey(0)
    # Small NCHW input consistent with a ResNet-style feature extractor.
    x = jax.random.normal(key, (2, 4, 16, 16), dtype=jnp.float32)

    model = FeaturesJAX()
    y = model.forward(x)
    y = jax.block_until_ready(y)

    # Sanity: identity semantics (the only well-defined behavior of the base).
    assert y.shape == x.shape and y.dtype == x.dtype
    assert bool(jnp.allclose(y, x))

    print("KERNEL_OK")
</pallas_src>

<mosaic_0001>
module attributes {stable_mosaic.version = 11 : i64} {
  func.func @_identity_kernel(%arg0: i32, %arg1: memref<1x2048xf32, #tpu.memory_space<vmem>>, %arg2: memref<1x2048xf32, #tpu.memory_space<vmem>>) attributes {dimension_semantics = [#tpu.dimension_semantics<parallel>], iteration_bounds = array<i64: 1>, scalar_prefetch = 0 : i64, scratch_operands = 0 : i64, tpu.core_type = #tpu.core_type<tc>, window_params = [{transform_indices = @transform_0, window_bounds = array<i64: 1, 2048>}, {transform_indices = @transform_1, window_bounds = array<i64: 1, 2048>}]} {
    %c0 = arith.constant 0 : index
    %c0_0 = arith.constant 0 : index
    %0 = vector.load %arg1[%c0, %c0_0] : memref<1x2048xf32, #tpu.memory_space<vmem>>, vector<1x2048xf32>
    %c0_1 = arith.constant 0 : index
    %c0_2 = arith.constant 0 : index
    %1 = vector.load %arg2[%c0_1, %c0_2] : memref<1x2048xf32, #tpu.memory_space<vmem>>, vector<1x2048xf32>
    tpu.vector_store %arg2[%c0_1, %c0_2], %0 {strides = array<i32>} : memref<1x2048xf32, #tpu.memory_space<vmem>>, vector<1x2048xf32>,
    return
  }
  func.func @transform_0(%arg0: i32) -> (i32, i32) {
    %c0_i32 = arith.constant 0 : i32
    %c0_i32_0 = arith.constant 0 : i32
    return %arg0, %c0_i32 : i32, i32
  }
  func.func @transform_1(%arg0: i32) -> (i32, i32) {
    %c0_i32 = arith.constant 0 : i32
    %c0_i32_0 = arith.constant 0 : i32
    return %arg0, %c0_i32 : i32, i32
  }
}

</mosaic_0001>

<llo_original>
// kernel: tpu_custom_call.1
$region0: #{tpu_custom_call.1}
  #allocation0 [shape = 'u32[]', space=smem, size = 0x4, offset = 0x4, fixed_abs, tag = 'smem constant byte address 0x4 - core index']
  #allocation1 [shape = 'u32[144,128]{1,0:T(1,128)}', space=vmem, size = 0x12000, scoped, tag = 'internal scratch']
  %s0 = inlined_call_operand.hbm [shape: f32[1,2048], index: 0, kind: input, shape index: {}]
  %s1 = inlined_call_operand.hbm [shape: f32[1,2048], index: 1, kind: output, shape index: {}]
  %s2 = sld [smem:[#allocation0]]
  $region18: #{tpu_custom_call.1} parent=0
    _
  %s4 = ssub.s32 1, %s2
  %s5 = scalar_select 0, %s4, %s2
  $region1: #{tpu_custom_call.1} parent=0
    #allocation2 [shape = 'u8[8192]{0}', space=vmem, size = 0x2000, scoped, tag = 'input window, operand 0, single buffered']
    #allocation3 [shape = 's32[1]{0}', space=sflag, size = 0x4, scoped, tag = 'scoped memory for tpu_custom_call.1']
    #allocation4 [shape = 's32[1]{0}', space=sflag, size = 0x4, scoped, tag = 'scoped memory for tpu_custom_call.1']
    #allocation5 [shape = 'u8[8192]{0}', space=vmem, size = 0x2000, scoped, tag = 'output window, operand 0, single buffered']
    %6 = vsyncpa [#allocation3], 0
    %7 = vsyncpa [#allocation4], 0
    // Predicated region
    $region2: #{tpu_custom_call.1} parent=1 // pred_check
      _
    $region3: #{tpu_custom_call.1} parent=1 // pred_check_branch
      %9 = sbr.rel (0) target = $region5
    $region4: #{tpu_custom_call.1} parent=1 // pred_region
      %s11 = ssub.s32 256, 256
      %12 = vsyncadd [#allocation3], %s11
      %s14 = sshll.u32 [#allocation2], 4
      %s15 = int_to_ptr.vmem [resolvable:$true] %s14
      %17 = dma.hbm_to_vmem [thread:$0]  %s0, 256, %s15, [#allocation3]
    $region5: #{tpu_custom_call.1} parent=1 // pred_fallthru
      _
    // Predicated region
    $region6: #{tpu_custom_call.1} parent=1 // pred_check
      _
    $region7: #{tpu_custom_call.1} parent=1 // pred_check_branch
      %19 = sbr.rel (0) target = $region9
    $region8: #{tpu_custom_call.1} parent=1 // pred_region
      %20 = dma.done [#allocation3], 256
    $region9: #{tpu_custom_call.1} parent=1 // pred_fallthru
      _
    %v21 = vld [vmem:[#allocation2] sm:$0xff]
    %v22 = vld [vmem:[#allocation2 + $0x8] sm:$0xff]
    %23 = vst [vmem:[#allocation5] sm:$0xff] %v21
    %24 = vst [vmem:[#allocation5 + $0x8] sm:$0xff] %v22
    // Predicated region
    $region10: #{tpu_custom_call.1} parent=1 // pred_check
      _
    $region11: #{tpu_custom_call.1} parent=1 // pred_check_branch
      %26 = sbr.rel (0) target = $region13
    $region12: #{tpu_custom_call.1} parent=1 // pred_region
      %s28 = ssub.s32 256, 256
      %29 = vsyncadd [#allocation4], %s28
      %s31 = sshll.u32 [#allocation5], 4
      %s32 = int_to_ptr.vmem [resolvable:$true] %s31
      %34 = dma.vmem_to_hbm [thread:$0]  %s32, 256, %s1, [#allocation4]
    $region13: #{tpu_custom_call.1} parent=1 // pred_fallthru
      _
    // Predicated region
    $region14: #{tpu_custom_call.1} parent=1 // pred_check
      _
    $region15: #{tpu_custom_call.1} parent=1 // pred_check_branch
      %36 = sbr.rel (0) target = $region17
    $region16: #{tpu_custom_call.1} parent=1 // pred_region
      %37 = dma.done [#allocation4], 256
    $region17: #{tpu_custom_call.1} parent=1 // pred_fallthru
      _
    %38 = vsyncpa [#allocation3], 1
    %39 = vsyncpa [#allocation4], 1

</llo_original>
